<compile_context>
chip_gen: v6e
topology: v6e:2x2x1
jax: 0.10.0
libtpu: 0.0.40
codegen_flags: <defaults>
</compile_context>

<pallas_src>
import jax
import jax.numpy as jnp
from jax import lax
from jax.experimental import pallas as pl
from jax.experimental.pallas import tpu as pltpu


def _ds_sf_kernel(x_ref, w_ref, b_ref, o_ref):
    """Fused 3x3 conv over pre-gathered kx taps.

    x_ref: (B_t, TH+2, W2, 3*Cin)  H-halo'd tiles; channel order = (kx, cin)
    w_ref: (3, Cout, 3*Cin)        weights grouped by ky tap
    b_ref: (Cout, 1)               bias (f32)
    o_ref: (Cout, B_t*TH*W2)       lane-dense output slab
    """
    B_t, th_p2, W2, K3 = x_ref.shape
    TH = th_p2 - 2
    M = B_t * TH * W2
    Cout = o_ref.shape[0]

    x = x_ref[...]
    acc = jnp.zeros((Cout, M), jnp.float32)
    # ky taps are leading-axis slices (free); each dot contracts K = 3*Cin.
    # TODO(synk): confirm via pl.lower_as_mlir that the transposed-RHS
    # dot_general (contracting dim 1 of both operands) emits no vxpose of patch.
    for ky in range(3):  # static unroll
        patch = x[:, ky:ky + TH, :, :].reshape(M, K3)
        acc = acc + lax.dot_general(
            w_ref[ky], patch,
            dimension_numbers=(((1,), (1,)), ((), ())),
            preferred_element_type=jnp.float32)
    acc = acc + b_ref[...].astype(jnp.float32)
    o_ref[...] = acc.astype(o_ref.dtype)


def _plan_tiling(N, H2, W2, K3, itemsize):
    """Choose (n_t, TH, B_t): H-tiles per image, tile height, tiles per step."""
    in_budget = 2 * 1024 * 1024  # bytes per (halo'd) input tile, per buffer

    def tile_bytes(th):
        return (th + 2) * W2 * K3 * itemsize

    # 1) split each image into n_t H-tiles so one halo'd tile fits the budget.
    n_t = 1
    for cand in range(1, H2 + 1):
        if H2 % cand:
            continue
        n_t = cand
        if tile_bytes(H2 // cand) <= in_budget:
            break
    TH = H2 // n_t

    # 2) group B_t consecutive tiles per grid step.  Priorities: output lane
    #    dim M a multiple of 128 (unmasked stores), >=2 grid steps (v7x
    #    megacore), then larger M to amortize per-step pipeline overhead.
    G = N * n_t
    candidates = []
    for b in range(1, G + 1):
        if G % b:
            continue
        M = b * TH * W2
        legal = (M % 128 == 0) or (b == G)     # (8,128) store constraint
        fits = (b == 1) or (b * tile_bytes(TH) <= in_budget)
        if legal and fits:
            candidates.append(b)
    if not candidates:
        candidates = [G]                        # full-dim block: always legal

    def key_of(b):
        M = b * TH * W2
        return (M % 128 == 0, (G // b) >= 2, min(M, 4096), -b)

    B_t = max(candidates, key=key_of)
    return n_t, TH, B_t


def ds_sf_forward(x_nchw, weight_oihw, bias, *, compute_dtype=jnp.bfloat16):
    """Forward pass of ds_sf.

    x_nchw:      (N, ch_in, H, W)     float32
    weight_oihw: (ch, 4*ch_in, 3, 3)  float32 (PyTorch Conv2d layout)
    bias:        (ch,)                float32
    returns:     (N, ch, H/2, W/2)    x dtype (NCHW, matches PyTorch)
    """
    N, C, H, W = x_nchw.shape
    assert H % 2 == 0 and W % 2 == 0, "PixelUnshuffle(2) needs even H, W"
    H2, W2 = H // 2, W // 2
    assert H2 >= 2 and W2 >= 2, "reflect padding needs H/2, W/2 >= 2"
    Cout, Cin, KH, KW = weight_oihw.shape
    assert Cin == 4 * C and KH == 3 and KW == 3
    K3 = 3 * Cin

    # --- wrapper layout pass (one fused XLA transform over the input) -------
    # PixelUnshuffle(2) fused with NCHW->NHWC:
    #   x_nhwc[n, h, w, c*4 + i*2 + j] = x[n, c, 2h+i, 2w+j]
    x = x_nchw.reshape(N, C, H2, 2, W2, 2)
    x = jnp.transpose(x, (0, 2, 4, 1, 3, 5)).reshape(N, H2, W2, Cin)

    # reflect-pad along W and gather the 3 kx taps onto channels: (.., 3*Cin)
    xw = jnp.pad(x, ((0, 0), (0, 0), (1, 1), (0, 0)), mode="reflect")
    x3 = jnp.concatenate(
        [xw[:, :, 0:W2], xw[:, :, 1:W2 + 1], xw[:, :, 2:W2 + 2]], axis=-1)

    # reflect-pad along H: (N, H2+2, W2, 3*Cin)
    x3p = jnp.pad(x3, ((0, 0), (1, 1), (0, 0), (0, 0)), mode="reflect")

    itemsize = jnp.dtype(compute_dtype).itemsize
    n_t, TH, B_t = _plan_tiling(N, H2, W2, K3, itemsize)

    # H-tiles with their 2-row halo materialized -> non-overlapping BlockSpecs.
    if n_t == 1:
        x_tiles = x3p
    else:
        x_tiles = jnp.stack(
            [x3p[:, t * TH: t * TH + TH + 2] for t in range(n_t)], axis=1
        ).reshape(N * n_t, TH + 2, W2, K3)
    x_tiles = x_tiles.astype(compute_dtype)

    # weights (Cout, Cin, 3, 3) -> (3, Cout, 3*Cin) grouped by ky,
    # with the (kx, c) flattening matching the kx-tap channel gather above.
    w3 = jnp.transpose(weight_oihw, (2, 0, 3, 1)).reshape(3, Cout, K3)
    w3 = w3.astype(compute_dtype)
    b2d = bias.reshape(Cout, 1).astype(jnp.float32)

    G = N * n_t
    M_blk = B_t * TH * W2
    grid = (G // B_t,)
    out_dtype = x_nchw.dtype

    out_flat = pl.pallas_call(
        _ds_sf_kernel,
        out_shape=jax.ShapeDtypeStruct((Cout, N * H2 * W2), out_dtype),
        grid_spec=pltpu.PrefetchScalarGridSpec(
            num_scalar_prefetch=0,
            grid=grid,
            in_specs=[
                pl.BlockSpec((B_t, TH + 2, W2, K3), lambda g: (g, 0, 0, 0)),
                pl.BlockSpec((3, Cout, K3), lambda g: (0, 0, 0)),
                pl.BlockSpec((Cout, 1), lambda g: (0, 0)),
            ],
            out_specs=pl.BlockSpec((Cout, M_blk), lambda g: (0, g)),
        ),
        compiler_params=pltpu.CompilerParams(
            dimension_semantics=("parallel",),
            vmem_limit_bytes=32 * 1024 * 1024,
        ),
    )(x_tiles, w3, b2d)

    # (Cout, N*H2*W2) -> NCHW.  Only the small Cout=ch output takes this extra
    # transpose pass; the (much larger) input never does.
    return jnp.transpose(out_flat.reshape(Cout, N, H2, W2), (1, 0, 2, 3))


def _pixel_unshuffle_2(x):
    N, C, H, W = x.shape
    x = x.reshape(N, C, H // 2, 2, W // 2, 2)
    x = jnp.transpose(x, (0, 1, 3, 5, 2, 4))
    return x.reshape(N, C * 4, H // 2, W // 2)


def _reference(x_nchw, weight_oihw, bias):
    # Pure-JAX f32 reference (PixelUnshuffle -> reflect pad -> conv).
    xu = _pixel_unshuffle_2(x_nchw)
    x_pad = jnp.pad(xu, ((0, 0), (0, 0), (1, 1), (1, 1)), mode="reflect")
    out = lax.conv_general_dilated(
        x_pad, weight_oihw, window_strides=(1, 1), padding="VALID",
        dimension_numbers=("NCHW", "OIHW", "NCHW"))
    return out + bias.reshape(1, -1, 1, 1)


if __name__ == "__main__":
    key = jax.random.PRNGKey(0)
    k1, k2, k3 = jax.random.split(key, 3)

    # Small shapes consistent with the module: ch_in=4, ch=8, H=W=16
    N, ch_in, H, W = 2, 4, 16, 16
    ch = 8
    cin4 = 4 * ch_in

    x = jax.random.normal(k1, (N, ch_in, H, W), dtype=jnp.float32)
    weight = jax.random.normal(k2, (ch, cin4, 3, 3), dtype=jnp.float32) * 0.1
    bias = jax.random.normal(k3, (ch,), dtype=jnp.float32) * 0.1

    ref = jax.block_until_ready(_reference(x, weight, bias))

    # f32 path: exact PyTorch semantics.
    out_f32 = jax.block_until_ready(
        ds_sf_forward(x, weight, bias, compute_dtype=jnp.float32))
    assert out_f32.shape == (N, ch, H // 2, W // 2)
    assert jnp.allclose(out_f32, ref, atol=1e-4, rtol=1e-4)

    # default: bf16 activations/weights at the kernel boundary, f32 accumulation.
    out = jax.block_until_ready(ds_sf_forward(x, weight, bias))
    assert out.shape == (N, ch, H // 2, W // 2)
    assert jnp.allclose(out, ref, atol=1e-1, rtol=1e-1)

    print("KERNEL_OK")
</pallas_src>

<mosaic_0001>
module attributes {stable_mosaic.version = 11 : i64} {
  func.func @_ds_sf_kernel(%arg0: i32, %arg1: memref<2x10x8x48xf32, #tpu.memory_space<vmem>>, %arg2: memref<3x8x48xf32, #tpu.memory_space<vmem>>, %arg3: memref<8x1xf32, #tpu.memory_space<vmem>>, %arg4: memref<8x128xf32, #tpu.memory_space<vmem>>) attributes {dimension_semantics = [#tpu.dimension_semantics<parallel>], iteration_bounds = array<i64: 1>, scalar_prefetch = 0 : i64, scratch_operands = 0 : i64, tpu.core_type = #tpu.core_type<tc>, window_params = [{transform_indices = @transform_0, window_bounds = array<i64: 2, 10, 8, 48>}, {pipeline_mode = #tpu.pipeline_mode<synchronous>, transform_indices = @transform_1, window_bounds = array<i64: 3, 8, 48>}, {pipeline_mode = #tpu.pipeline_mode<synchronous>, transform_indices = @transform_2, window_bounds = array<i64: 8, 1>}, {transform_indices = @transform_3, window_bounds = array<i64: 8, 128>}]} {
    %c0 = arith.constant 0 : index
    %c0_0 = arith.constant 0 : index
    %c0_1 = arith.constant 0 : index
    %c0_2 = arith.constant 0 : index
    %0 = vector.load %arg1[%c0, %c0_0, %c0_1, %c0_2] : memref<2x10x8x48xf32, #tpu.memory_space<vmem>>, vector<2x10x8x48xf32>
    %cst = arith.constant 0.000000e+00 : f32
    %1 = vector.broadcast %cst : f32 to vector<8x128xf32>
    %2 = vector.extract_strided_slice %0 {offsets = [0, 0, 0, 0], sizes = [2, 8, 8, 48], strides = [1, 1, 1, 1]} : vector<2x10x8x48xf32> to vector<2x8x8x48xf32>
    %3 = vector.shape_cast %2 : vector<2x8x8x48xf32> to vector<128x48xf32>
    %c0_3 = arith.constant 0 : index
    %c0_4 = arith.constant 0 : index
    %c0_5 = arith.constant 0 : index
    %4 = vector.load %arg2[%c0_3, %c0_4, %c0_5] : memref<3x8x48xf32, #tpu.memory_space<vmem>>, vector<1x8x48xf32>
    %5 = vector.shape_cast %4 : vector<1x8x48xf32> to vector<8x48xf32>
    %cst_6 = arith.constant dense<0.000000e+00> : vector<8x128xf32>
    %6 = tpu.matmul %5, %3, %cst_6 {dimension_numbers = #tpu.dot_dimension_numbers<[1], [1], [0], [0], [0, 0, 1, 0], [], []>} : vector<8x48xf32>, vector<128x48xf32>, vector<8x128xf32> -> vector<8x128xf32>
    %7 = arith.addf %1, %6 : vector<8x128xf32>
    %8 = vector.extract_strided_slice %0 {offsets = [0, 1, 0, 0], sizes = [2, 8, 8, 48], strides = [1, 1, 1, 1]} : vector<2x10x8x48xf32> to vector<2x8x8x48xf32>
    %9 = vector.shape_cast %8 : vector<2x8x8x48xf32> to vector<128x48xf32>
    %c1 = arith.constant 1 : index
    %c0_7 = arith.constant 0 : index
    %c0_8 = arith.constant 0 : index
    %10 = vector.load %arg2[%c1, %c0_7, %c0_8] : memref<3x8x48xf32, #tpu.memory_space<vmem>>, vector<1x8x48xf32>
    %11 = vector.shape_cast %10 : vector<1x8x48xf32> to vector<8x48xf32>
    %cst_9 = arith.constant dense<0.000000e+00> : vector<8x128xf32>
    %12 = tpu.matmul %11, %9, %cst_9 {dimension_numbers = #tpu.dot_dimension_numbers<[1], [1], [0], [0], [0, 0, 1, 0], [], []>} : vector<8x48xf32>, vector<128x48xf32>, vector<8x128xf32> -> vector<8x128xf32>
    %13 = arith.addf %7, %12 : vector<8x128xf32>
    %14 = vector.extract_strided_slice %0 {offsets = [0, 2, 0, 0], sizes = [2, 8, 8, 48], strides = [1, 1, 1, 1]} : vector<2x10x8x48xf32> to vector<2x8x8x48xf32>
    %15 = vector.shape_cast %14 : vector<2x8x8x48xf32> to vector<128x48xf32>
    %c2 = arith.constant 2 : index
    %c0_10 = arith.constant 0 : index
    %c0_11 = arith.constant 0 : index
    %16 = vector.load %arg2[%c2, %c0_10, %c0_11] : memref<3x8x48xf32, #tpu.memory_space<vmem>>, vector<1x8x48xf32>
    %17 = vector.shape_cast %16 : vector<1x8x48xf32> to vector<8x48xf32>
    %cst_12 = arith.constant dense<0.000000e+00> : vector<8x128xf32>
    %18 = tpu.matmul %17, %15, %cst_12 {dimension_numbers = #tpu.dot_dimension_numbers<[1], [1], [0], [0], [0, 0, 1, 0], [], []>} : vector<8x48xf32>, vector<128x48xf32>, vector<8x128xf32> -> vector<8x128xf32>
    %19 = arith.addf %13, %18 : vector<8x128xf32>
    %c0_13 = arith.constant 0 : index
    %c0_14 = arith.constant 0 : index
    %20 = vector.load %arg3[%c0_13, %c0_14] : memref<8x1xf32, #tpu.memory_space<vmem>>, vector<8x1xf32>
    %21 = vector.broadcast %20 : vector<8x1xf32> to vector<8x128xf32>
    %22 = arith.addf %19, %21 : vector<8x128xf32>
    %c0_15 = arith.constant 0 : index
    %c0_16 = arith.constant 0 : index
    %23 = vector.load %arg4[%c0_15, %c0_16] : memref<8x128xf32, #tpu.memory_space<vmem>>, vector<8x128xf32>
    tpu.vector_store %arg4[%c0_15, %c0_16], %22 {strides = array<i32>} : memref<8x128xf32, #tpu.memory_space<vmem>>, vector<8x128xf32>,
    return
  }
  func.func @transform_0(%arg0: i32) -> (i32, i32, i32, i32) {
    %c0_i32 = arith.constant 0 : i32
    %c0_i32_0 = arith.constant 0 : i32
    %c0_i32_1 = arith.constant 0 : i32
    %c0_i32_2 = arith.constant 0 : i32
    return %arg0, %c0_i32, %c0_i32_0, %c0_i32_1 : i32, i32, i32, i32
  }
  func.func @transform_1(%arg0: i32) -> (i32, i32, i32) {
    %c0_i32 = arith.constant 0 : i32
    %c0_i32_0 = arith.constant 0 : i32
    %c0_i32_1 = arith.constant 0 : i32
    %c0_i32_2 = arith.constant 0 : i32
    return %c0_i32, %c0_i32_0, %c0_i32_1 : i32, i32, i32
  }
  func.func @transform_2(%arg0: i32) -> (i32, i32) {
    %c0_i32 = arith.constant 0 : i32
    %c0_i32_0 = arith.constant 0 : i32
    %c0_i32_1 = arith.constant 0 : i32
    return %c0_i32, %c0_i32_0 : i32, i32
  }
  func.func @transform_3(%arg0: i32) -> (i32, i32) {
    %c0_i32 = arith.constant 0 : i32
    %c0_i32_0 = arith.constant 0 : i32
    return %c0_i32, %arg0 : i32, i32
  }
}

</mosaic_0001>

<llo_original>
// kernel: tpu_custom_call.1
$region0: #{tpu_custom_call.1}
  #allocation0 [shape = 'u32[]', space=smem, size = 0x4, offset = 0x4, fixed_abs, tag = 'smem constant byte address 0x4 - core index']
  #allocation1 [shape = 'u32[144,128]{1,0:T(1,128)}', space=vmem, size = 0x12000, scoped, tag = 'internal scratch']
  %s0 = inlined_call_operand.hbm [shape: f32[2,10,8,48], index: 0, kind: input, shape index: {}]
  %s1 = inlined_call_operand.hbm [shape: f32[3,8,48], index: 1, kind: input, shape index: {}]
  %s2 = inlined_call_operand.vmem [shape: f32[8,1], index: 2, kind: input, shape index: {}]
  %s3 = inlined_call_operand.hbm [shape: f32[8,128], index: 3, kind: output, shape index: {}]
  %s4 = sld [smem:[#allocation0]]
  $region30: #{tpu_custom_call.1} parent=0
    _
  %s6 = ssub.s32 1, %s4
  %s7 = scalar_select 0, %s6, %s4
  $region1: #{tpu_custom_call.1} parent=0
    #allocation2 [shape = 'u8[81920]{0}', space=vmem, size = 0x14000, scoped, tag = 'input window, operand 0, single buffered']
    #allocation3 [shape = 's32[1]{0}', space=sflag, size = 0x4, scoped, tag = 'scoped memory for tpu_custom_call.1']
    #allocation4 [shape = 's32[1]{0}', space=sflag, size = 0x4, scoped, tag = 'scoped memory for tpu_custom_call.1']
    #allocation5 [shape = 'u8[12288]{0}', space=vmem, size = 0x3000, scoped, tag = 'input window, operand 1, single buffered']
    #allocation6 [shape = 's32[1]{0}', space=sflag, size = 0x4, scoped, tag = 'scoped memory for tpu_custom_call.1']
    #allocation7 [shape = 'u8[4096]{0}', space=vmem, size = 0x1000, scoped, tag = 'output window, operand 0, single buffered']
    %8 = vsyncpa [#allocation3], 0
    %9 = vsyncpa [#allocation6], 0
    %10 = vsyncpa [#allocation4], 0
    // Predicated region
    $region2: #{tpu_custom_call.1} parent=1 // pred_check
      _
    $region3: #{tpu_custom_call.1} parent=1 // pred_check_branch
      %12 = sbr.rel (0) target = $region5
    $region4: #{tpu_custom_call.1} parent=1 // pred_region
      %s14 = ssub.s32 2560, 2560
      %15 = vsyncadd [#allocation3], %s14
      %s16 = sshll.u32 [#allocation2], 4
      %s17 = int_to_ptr.vmem [resolvable:$true] %s16
      %22 = dma.hbm_to_vmem [thread:$0]  %s0, 2560, %s17, [#allocation3], 128, 128, 8
    $region5: #{tpu_custom_call.1} parent=1 // pred_fallthru
      _
    // Predicated region
    $region6: #{tpu_custom_call.1} parent=1 // pred_check
      _
    $region7: #{tpu_custom_call.1} parent=1 // pred_check_branch
      %24 = sbr.rel (0) target = $region9
    $region8: #{tpu_custom_call.1} parent=1 // pred_region
      %s26 = ssub.s32 384, 384
      %27 = vsyncadd [#allocation6], %s26
      %s28 = sshll.u32 [#allocation5], 4
      %s29 = int_to_ptr.vmem [resolvable:$true] %s28
      %34 = dma.hbm_to_vmem [thread:$0]  %s1, 384, %s29, [#allocation6], 128, 128, 8
    $region9: #{tpu_custom_call.1} parent=1 // pred_fallthru
      _
    // Predicated region
    $region10: #{tpu_custom_call.1} parent=1 // pred_check
      _
    $region11: #{tpu_custom_call.1} parent=1 // pred_check_branch
      %36 = sbr.rel (0) target = $region13
    $region12: #{tpu_custom_call.1} parent=1 // pred_region
      _
    $region13: #{tpu_custom_call.1} parent=1 // pred_fallthru
      _
    // Predicated region
    $region14: #{tpu_custom_call.1} parent=1 // pred_check
      _
    $region15: #{tpu_custom_call.1} parent=1 // pred_check_branch
      %38 = sbr.rel (0) target = $region17
    $region16: #{tpu_custom_call.1} parent=1 // pred_region
      %39 = dma.done [#allocation3], 2560
    $region17: #{tpu_custom_call.1} parent=1 // pred_fallthru
      _
    // Predicated region
    $region18: #{tpu_custom_call.1} parent=1 // pred_check
      _
    $region19: #{tpu_custom_call.1} parent=1 // pred_check_branch
      %41 = sbr.rel (0) target = $region21
    $region20: #{tpu_custom_call.1} parent=1 // pred_region
      %42 = dma.done [#allocation6], 384
    $region21: #{tpu_custom_call.1} parent=1 // pred_fallthru
      _
    %v43 = vld [vmem:[#allocation2] sm:$0xff]
    %v44 = vld [vmem:[#allocation2 + $0x8] sm:$0xff]
    %v45 = vld [vmem:[#allocation2 + $0x10] sm:$0xff]
    %v46 = vld [vmem:[#allocation2 + $0x18] sm:$0xff]
    %v47 = vld [vmem:[#allocation2 + $0x20] sm:$0xff]
    %v48 = vld [vmem:[#allocation2 + $0x28] sm:$0xff]
    %v49 = vld [vmem:[#allocation2 + $0x30] sm:$0xff]
    %v50 = vld [vmem:[#allocation2 + $0x38] sm:$0xff]
    %v51 = vld [vmem:[#allocation2 + $0x40] sm:$0xff]
    %v52 = vld [vmem:[#allocation2 + $0x48] sm:$0xff]
    %v53 = vld [vmem:[#allocation2 + $0x50] sm:$0xff]
    %v54 = vld [vmem:[#allocation2 + $0x58] sm:$0xff]
    %v55 = vld [vmem:[#allocation2 + $0x60] sm:$0xff]
    %v56 = vld [vmem:[#allocation2 + $0x68] sm:$0xff]
    %v57 = vld [vmem:[#allocation2 + $0x70] sm:$0xff]
    %v58 = vld [vmem:[#allocation2 + $0x78] sm:$0xff]
    %v59 = vld [vmem:[#allocation2 + $0x80] sm:$0xff]
    %v60 = vld [vmem:[#allocation2 + $0x88] sm:$0xff]
    %v61 = vld [vmem:[#allocation2 + $0x90] sm:$0xff]
    %v62 = vld [vmem:[#allocation2 + $0x98] sm:$0xff]
    %v63 = vld [vmem:[#allocation5] sm:$0xff]
    %s64 = scalar_lea.vmem [#allocation5], 8
    %v65 = vld [vmem:[%s64] sm:$0xff]
    %vm66 = vcmask 392192
    %v68 = vsel %vm66, %v65, 0
    %v71 = vsel %vm66, %v44, 0
    %v74 = vsel %vm66, %v45, 0
    %v77 = vsel %vm66, %v46, 0
    %v80 = vsel %vm66, %v47, 0
    %v83 = vsel %vm66, %v48, 0
    %v86 = vsel %vm66, %v49, 0
    %v89 = vsel %vm66, %v50, 0
    %v92 = vsel %vm66, %v51, 0
    %v95 = vsel %vm66, %v54, 0
    %v98 = vsel %vm66, %v55, 0
    %v101 = vsel %vm66, %v56, 0
    %v104 = vsel %vm66, %v57, 0
    %v107 = vsel %vm66, %v58, 0
    %v110 = vsel %vm66, %v59, 0
    %v113 = vsel %vm66, %v60, 0
    %v116 = vsel %vm66, %v61, 0
    %118 = vmatprep.subr.mxu0 0.0
    %119 = vmatpush1.xpose.msra.mxu0 %v116
    %120 = vmatprep.subr.mxu0 0.0
    %121 = vmatpush1.xpose.msra.mxu0 %v113
    %122 = vmatprep.subr.mxu0 0.0
    %123 = vmatpush1.xpose.msra.mxu0 %v110
    %124 = vmatprep.subr.mxu0 0.0
    %125 = vmatpush1.xpose.msra.mxu0 %v107
    %126 = vmatprep.subr.mxu0 0.0
    %127 = vmatpush1.xpose.msra.mxu0 %v104
    %128 = vmatprep.subr.mxu0 0.0
    %129 = vmatpush1.xpose.msra.mxu0 %v101
    %130 = vmatprep.subr.mxu0 0.0
    %131 = vmatpush1.xpose.msra.mxu0 %v98
    %132 = vmatprep.subr.mxu0 0.0
    %133 = vmatpush1.xpose.msra.mxu0 %v95
    %134 = vmatprep.subr.mxu0 0.0
    %135 = vmatpush1.xpose.msra.mxu0 %v92
    %136 = vmatprep.subr.mxu0 0.0
    %137 = vmatpush1.xpose.msra.mxu0 %v89
    %138 = vmatprep.subr.mxu0 0.0
    %139 = vmatpush1.xpose.msra.mxu0 %v86
    %140 = vmatprep.subr.mxu0 0.0
    %141 = vmatpush1.xpose.msra.mxu0 %v83
    %142 = vmatprep.subr.mxu0 0.0
    %143 = vmatpush1.xpose.msra.mxu0 %v80
    %144 = vmatprep.subr.mxu0 0.0
    %145 = vmatpush1.xpose.msra.mxu0 %v77
    %146 = vmatprep.subr.mxu0 0.0
    %147 = vmatpush1.xpose.msra.mxu0 %v74
    %148 = vmatprep.subr.mxu0 0.0
    %149 = vmatpush1.xpose.msra.mxu0 %v71
    %150 = vmatprep.subr.mxu0 0.0
    %151 = vmatpush2.xpose.msra.mxu0 0.0
    %152 = vmatprep.subr.mxu0 0.0
    %153 = vmatpush2.xpose.msra.mxu0 0.0
    %154 = vmatprep.subr.mxu0 0.0
    %155 = vmatpush2.xpose.msra.mxu0 0.0
    %156 = vmatprep.subr.mxu0 0.0
    %157 = vmatpush2.xpose.msra.mxu0 0.0
    %158 = vmatprep.subr.mxu0 0.0
    %159 = vmatpush2.xpose.msra.mxu0 0.0
    %160 = vmatprep.subr.mxu0 0.0
    %161 = vmatpush2.xpose.msra.mxu0 0.0
    %162 = vmatprep.subr.mxu0 0.0
    %163 = vmatpush2.xpose.msra.mxu0 0.0
    %164 = vmatprep.subr.mxu0 0.0
    %165 = vmatpush2.xpose.msra.mxu0 0.0
    %166 = vmatprep.subr.mxu0 0.0
    %167 = vmatpush2.xpose.msra.mxu0 0.0
    %168 = vmatprep.subr.mxu0 0.0
    %169 = vmatpush2.xpose.msra.mxu0 0.0
    %170 = vmatprep.subr.mxu0 0.0
    %171 = vmatpush2.xpose.msra.mxu0 0.0
    %172 = vmatprep.subr.mxu0 0.0
    %173 = vmatpush2.xpose.msra.mxu0 0.0
    %174 = vmatprep.subr.mxu0 0.0
    %175 = vmatpush2.xpose.msra.mxu0 0.0
    %176 = vmatprep.subr.mxu0 0.0
    %177 = vmatpush2.xpose.msra.mxu0 0.0
    %178 = vmatprep.subr.mxu0 0.0
    %179 = vmatpush2.xpose.msra.mxu0 0.0
    %180 = vmatprep.subr.mxu0 0.0
    %181 = vmatpush2.xpose.msra.mxu0 0.0
    %182 = vmatprep.mubr.f32.mxu0 0.0
    %183 = vmatmul.mubr.f32.gmra.mxu0 %v68
    %v184 = vpop.f32.mrf.mxu0
    %v185 = vadd.f32 0.0, %v184
    %v186 = vpop.f32.mrf.mxu0
    %187 = vdwg.mxu0
    %v189 = vsel %vm66, %v63, 0
    %v192 = vsel %vm66, %v43, 0
    %v195 = vsel %vm66, %v53, 0
    %197 = vmatprep.subr.mxu0 0.0
    %198 = vmatpush1.xpose.msra.mxu0 %v113
    %199 = vmatprep.subr.mxu0 0.0
    %200 = vmatpush1.xpose.msra.mxu0 %v110
    %201 = vmatprep.subr.mxu0 0.0
    %202 = vmatpush1.xpose.msra.mxu0 %v107
    %203 = vmatprep.subr.mxu0 0.0
    %204 = vmatpush1.xpose.msra.mxu0 %v104
    %205 = vmatprep.subr.mxu0 0.0
    %206 = vmatpush1.xpose.msra.mxu0 %v101
    %207 = vmatprep.subr.mxu0 0.0
    %208 = vmatpush1.xpose.msra.mxu0 %v98
    %209 = vmatprep.subr.mxu0 0.0
    %210 = vmatpush1.xpose.msra.mxu0 %v95
    %211 = vmatprep.subr.mxu0 0.0
    %212 = vmatpush1.xpose.msra.mxu0 %v195
    %213 = vmatprep.subr.mxu0 0.0
    %214 = vmatpush1.xpose.msra.mxu0 %v89
    %215 = vmatprep.subr.mxu0 0.0
    %216 = vmatpush1.xpose.msra.mxu0 %v86
    %217 = vmatprep.subr.mxu0 0.0
    %218 = vmatpush1.xpose.msra.mxu0 %v83
    %219 = vmatprep.subr.mxu0 0.0
    %220 = vmatpush1.xpose.msra.mxu0 %v80
    %221 = vmatprep.subr.mxu0 0.0
    %222 = vmatpush1.xpose.msra.mxu0 %v77
    %223 = vmatprep.subr.mxu0 0.0
    %224 = vmatpush1.xpose.msra.mxu0 %v74
    %225 = vmatprep.subr.mxu0 0.0
    %226 = vmatpush1.xpose.msra.mxu0 %v71
    %227 = vmatprep.subr.mxu0 0.0
    %228 = vmatpush1.xpose.msra.mxu0 %v192
    %229 = vmatprep.subr.mxu0 0.0
    %230 = vmatpush2.xpose.msra.mxu0 0.0
    %231 = vmatprep.subr.mxu0 0.0
    %232 = vmatpush2.xpose.msra.mxu0 0.0
    %233 = vmatprep.subr.mxu0 0.0
    %234 = vmatpush2.xpose.msra.mxu0 0.0
    %235 = vmatprep.subr.mxu0 0.0
    %236 = vmatpush2.xpose.msra.mxu0 0.0
    %237 = vmatprep.subr.mxu0 0.0
    %238 = vmatpush2.xpose.msra.mxu0 0.0
    %239 = vmatprep.subr.mxu0 0.0
    %240 = vmatpush2.xpose.msra.mxu0 0.0
    %241 = vmatprep.subr.mxu0 0.0
    %242 = vmatpush2.xpose.msra.mxu0 0.0
    %243 = vmatprep.subr.mxu0 0.0
    %244 = vmatpush2.xpose.msra.mxu0 0.0
    %245 = vmatprep.subr.mxu0 0.0
    %246 = vmatpush2.xpose.msra.mxu0 0.0
    %247 = vmatprep.subr.mxu0 0.0
    %248 = vmatpush2.xpose.msra.mxu0 0.0
    %249 = vmatprep.subr.mxu0 0.0
    %250 = vmatpush2.xpose.msra.mxu0 0.0
    %251 = vmatprep.subr.mxu0 0.0
    %252 = vmatpush2.xpose.msra.mxu0 0.0
    %253 = vmatprep.subr.mxu0 0.0
    %254 = vmatpush2.xpose.msra.mxu0 0.0
    %255 = vmatprep.subr.mxu0 0.0
    %256 = vmatpush2.xpose.msra.mxu0 0.0
    %257 = vmatprep.subr.mxu0 0.0
    %258 = vmatpush2.xpose.msra.mxu0 0.0
    %259 = vmatprep.subr.mxu0 0.0
    %260 = vmatpush2.xpose.msra.mxu0 0.0
    %261 = vmatprep.mubr.f32.mxu0 0.0
    %262 = vmatmul.mubr.f32.gmra.mxu0 %v189
    %v263 = vpop.f32.mrf.mxu0
    %v264 = vadd.f32 %v185, %v263
    %v265 = vpop.f32.mrf.mxu0
    %266 = vdwg.mxu0
    %s267 = scalar_lea.vmem [#allocation5], 16
    %v268 = vld [vmem:[%s267] sm:$0xff]
    %v270 = vsel %vm66, %v268, 0
    %v273 = vsel %vm66, %v52, 0
    %v276 = vsel %vm66, %v62, 0
    %278 = vmatprep.subr.mxu0 0.0
    %279 = vmatpush1.xpose.msra.mxu0 %v276
    %280 = vmatprep.subr.mxu0 0.0
    %281 = vmatpush1.xpose.msra.mxu0 %v116
    %282 = vmatprep.subr.mxu0 0.0
    %283 = vmatpush1.xpose.msra.mxu0 %v113
    %284 = vmatprep.subr.mxu0 0.0
    %285 = vmatpush1.xpose.msra.mxu0 %v110
    %286 = vmatprep.subr.mxu0 0.0
    %287 = vmatpush1.xpose.msra.mxu0 %v107
    %288 = vmatprep.subr.mxu0 0.0
    %289 = vmatpush1.xpose.msra.mxu0 %v104
    %290 = vmatprep.subr.mxu0 0.0
    %291 = vmatpush1.xpose.msra.mxu0 %v101
    %292 = vmatprep.subr.mxu0 0.0
    %293 = vmatpush1.xpose.msra.mxu0 %v98
    %294 = vmatprep.subr.mxu0 0.0
    %295 = vmatpush1.xpose.msra.mxu0 %v273
    %296 = vmatprep.subr.mxu0 0.0
    %297 = vmatpush1.xpose.msra.mxu0 %v92
    %298 = vmatprep.subr.mxu0 0.0
    %299 = vmatpush1.xpose.msra.mxu0 %v89
    %300 = vmatprep.subr.mxu0 0.0
    %301 = vmatpush1.xpose.msra.mxu0 %v86
    %302 = vmatprep.subr.mxu0 0.0
    %303 = vmatpush1.xpose.msra.mxu0 %v83
    %304 = vmatprep.subr.mxu0 0.0
    %305 = vmatpush1.xpose.msra.mxu0 %v80
    %306 = vmatprep.subr.mxu0 0.0
    %307 = vmatpush1.xpose.msra.mxu0 %v77
    %308 = vmatprep.subr.mxu0 0.0
    %309 = vmatpush1.xpose.msra.mxu0 %v74
    %310 = vmatprep.subr.mxu0 0.0
    %311 = vmatpush2.xpose.msra.mxu0 0.0
    %312 = vmatprep.subr.mxu0 0.0
    %313 = vmatpush2.xpose.msra.mxu0 0.0
    %314 = vmatprep.subr.mxu0 0.0
    %315 = vmatpush2.xpose.msra.mxu0 0.0
    %316 = vmatprep.subr.mxu0 0.0
    %317 = vmatpush2.xpose.msra.mxu0 0.0
    %318 = vmatprep.subr.mxu0 0.0
    %319 = vmatpush2.xpose.msra.mxu0 0.0
    %320 = vmatprep.subr.mxu0 0.0
    %321 = vmatpush2.xpose.msra.mxu0 0.0
    %322 = vmatprep.subr.mxu0 0.0
    %323 = vmatpush2.xpose.msra.mxu0 0.0
    %324 = vmatprep.subr.mxu0 0.0
    %325 = vmatpush2.xpose.msra.mxu0 0.0
    %326 = vmatprep.subr.mxu0 0.0
    %327 = vmatpush2.xpose.msra.mxu0 0.0
    %328 = vmatprep.subr.mxu0 0.0
    %329 = vmatpush2.xpose.msra.mxu0 0.0
    %330 = vmatprep.subr.mxu0 0.0
    %331 = vmatpush2.xpose.msra.mxu0 0.0
    %332 = vmatprep.subr.mxu0 0.0
    %333 = vmatpush2.xpose.msra.mxu0 0.0
    %334 = vmatprep.subr.mxu0 0.0
    %335 = vmatpush2.xpose.msra.mxu0 0.0
    %336 = vmatprep.subr.mxu0 0.0
    %337 = vmatpush2.xpose.msra.mxu0 0.0
    %338 = vmatprep.subr.mxu0 0.0
    %339 = vmatpush2.xpose.msra.mxu0 0.0
    %340 = vmatprep.subr.mxu0 0.0
    %341 = vmatpush2.xpose.msra.mxu0 0.0
    %342 = vmatprep.mubr.f32.mxu0 0.0
    %343 = vmatmul.mubr.f32.gmra.mxu0 %v270
    %v344 = vpop.f32.mrf.mxu0
    %v345 = vadd.f32 0.0, %v344
    %v346 = vpop.f32.mrf.mxu0
    %347 = vdwg.mxu0
    %v348 = vadd.f32 %v264, %v345
    %v349 = vld [vmem:[%s2] sm:$0xff]
    %351 = vset.pattern.permute.xlu0 0
    %352 = vperm.xlu0 %351, %v349
    %v353 = vpop.permute.xlu0 %352
    %v355 = vadd.f32 %v348, %v353
    %356 = vst [vmem:[#allocation7] sm:$0xff] %v355
    // Predicated region
    $region22: #{tpu_custom_call.1} parent=1 // pred_check
      _
    $region23: #{tpu_custom_call.1} parent=1 // pred_check_branch
      %358 = sbr.rel (0) target = $region25
    $region24: #{tpu_custom_call.1} parent=1 // pred_region
      %s360 = ssub.s32 128, 128
      %361 = vsyncadd [#allocation4], %s360
      %s363 = sshll.u32 [#allocation7], 4
      %s364 = int_to_ptr.vmem [resolvable:$true] %s363
      %366 = dma.vmem_to_hbm [thread:$0]  %s364, 128, %s3, [#allocation4]
    $region25: #{tpu_custom_call.1} parent=1 // pred_fallthru
      _
    // Predicated region
    $region26: #{tpu_custom_call.1} parent=1 // pred_check
      _
    $region27: #{tpu_custom_call.1} parent=1 // pred_check_branch
      %368 = sbr.rel (0) target = $region29
    $region28: #{tpu_custom_call.1} parent=1 // pred_region
      %369 = dma.done [#allocation4], 128
    $region29: #{tpu_custom_call.1} parent=1 // pred_fallthru
      _
    %370 = vsyncpa [#allocation3], 1
    %371 = vsyncpa [#allocation6], 1
    %372 = vsyncpa [#allocation4], 1

</llo_original>
